<compile_context>
chip_gen: v7x
topology: tpu7x:2x2x1
jax: 0.10.0
libtpu: 0.0.40
codegen_flags: <defaults>
</compile_context>

<pallas_src>
import jax
import jax.numpy as jnp
from jax.experimental import pallas as pl
from jax.experimental.pallas import tpu as pltpu

INPUT_SIZE = 32      # sliding_window_size
HIDDEN_SIZE = 64     # sliding_window_size * 2
OUTPUT_SIZE = 1

# Default batch tile: big enough that the ~0.35us per-grid-step overhead is
# amortized and the x-block DMA hides under compute; a multiple of 256 fills
# the MXU rows on v6e/v7x (and is >=128 for v5e). Footprint at 8192 stays well
# inside the default scoped-VMEM limit on all generations.
_DEFAULT_TILE_B = 8192
_MXU_ROWS = 256


def _round_up(n, m):
    return ((n + m - 1) // m) * m


def _mlp_kernel(x_ref, w1_ref, b1_ref, w2p_ref, b2_ref, o_ref):
    # ---- layer 1 on the MXU: (tile_b, IN) @ (IN, HID) -> (tile_b, HID), f32 acc.
    h = jnp.dot(x_ref[...], w1_ref[...], preferred_element_type=jnp.float32)
    h = jax.nn.sigmoid(h + b1_ref[...])                       # (tile_b, HID)

    # ---- layer 2: contract the hidden (lane) axis and land the batch axis in
    # lanes: (8, HID) x (tile_b, HID)^T -> (8, tile_b). Row 0 of w2p holds the
    # real output weights, rows 1..7 are zeros (M pads to a sublane tile anyway).
    # This avoids the degenerate N=1 matmul (1/256 of the MXU columns + FIFO
    # drain for nothing) *and* yields a lane-dense (1, tile_b) result directly,
    # so the final store is full-width vst instead of masked (tile_b, 1) stores.
    y = jax.lax.dot_general(
        w2p_ref[...], h,
        dimension_numbers=(((1,), (1,)), ((), ())),
        preferred_element_type=jnp.float32,
    )                                                         # (8, tile_b)
    y = y[0:1, :] + b2_ref[0]                                 # scalar bias from SMEM
    o_ref[...] = jax.nn.sigmoid(y).astype(o_ref.dtype)        # (1, tile_b)


def linear_net_forward(x, w1_t, b1, w2_row, b2, *, tile_b=_DEFAULT_TILE_B):
    """Forward pass of LinearNet.

    x:      (B, INPUT_SIZE)            f32
    w1_t:   (INPUT_SIZE, HIDDEN_SIZE)  f32  (PyTorch hidden.weight transposed)
    b1:     (1, HIDDEN_SIZE)           f32
    w2_row: (1, HIDDEN_SIZE)           f32  (PyTorch output.weight, (out, in))
    b2:     (1,)                       f32
    returns (B, OUTPUT_SIZE) f32
    """
    B, in_features = x.shape
    hidden = w1_t.shape[1]

    # Right-size the batch tile for small batches; keep it a multiple of 256.
    tile_b = min(tile_b, _round_up(B, _MXU_ROWS))
    b_pad = _round_up(B, tile_b)
    if b_pad != B:
        # Pad the batch so every grid step sees a full (tile_b, IN) block;
        # padded rows are sliced off below (rows are independent, so no mixing).
        x = jnp.pad(x, ((0, b_pad - B), (0, 0)))
    num_tiles = b_pad // tile_b

    # Zero-pad w2 to 8 rows so layer 2 is a clean (8, HID) LHS on the MXU.
    w2_pad = jnp.zeros((8, hidden), jnp.float32).at[0:1, :].set(w2_row)

    # TODO(synk): optionally cast x/w1_t to bf16 (keep f32 accumulation) to halve
    # HBM read traffic at large B; kept f32 here for exact parity with the ref.
    out = pl.pallas_call(
        _mlp_kernel,
        out_shape=jax.ShapeDtypeStruct((1, b_pad), jnp.float32),
        grid=(num_tiles,),
        in_specs=[
            # x streamed over the batch grid -> Pallas double-buffers it, so the
            # DMA of block i+1 overlaps compute of block i.
            pl.BlockSpec((tile_b, in_features), lambda i: (i, 0)),
            # Weights / b1: constant index map -> fetched once, stay resident in
            # VMEM across all grid steps.
            pl.BlockSpec((in_features, hidden), lambda i: (0, 0)),
            pl.BlockSpec((1, hidden), lambda i: (0, 0)),
            pl.BlockSpec((8, hidden), lambda i: (0, 0)),
            # b2 is a single scalar -> SMEM (no lane-padded VMEM tile / DMA for 4 B).
            pl.BlockSpec(memory_space=pltpu.MemorySpace.SMEM),
        ],
        # Lane-dense output: one (1, tile_b) row per grid step.
        out_specs=pl.BlockSpec((1, tile_b), lambda i: (0, i)),
        compiler_params=pltpu.CompilerParams(
            # Batch axis is embarrassingly parallel -> lets Mosaic shard grid
            # steps across both TensorCores on v7x (harmless on v5e/v6e).
            dimension_semantics=("parallel",),
        ),
    )(x, w1_t, b1, w2_pad, b2)

    # (1, b_pad) -> (B, 1); drop padding.
    return out[0, :B][:, None]


def init_params(key):
    """Deterministic init matching PyTorch nn.Linear default:
    U(-1/sqrt(fan_in), 1/sqrt(fan_in)) for both weight and bias."""
    k1, k2, k3, k4 = jax.random.split(key, 4)
    bound1 = 1.0 / jnp.sqrt(jnp.float32(INPUT_SIZE))
    bound2 = 1.0 / jnp.sqrt(jnp.float32(HIDDEN_SIZE))
    w1_t = jax.random.uniform(k1, (INPUT_SIZE, HIDDEN_SIZE), jnp.float32,
                              minval=-bound1, maxval=bound1)
    b1 = jax.random.uniform(k2, (1, HIDDEN_SIZE), jnp.float32,
                            minval=-bound1, maxval=bound1)
    w2_row = jax.random.uniform(k3, (1, HIDDEN_SIZE), jnp.float32,
                                minval=-bound2, maxval=bound2)
    b2 = jax.random.uniform(k4, (1,), jnp.float32,
                            minval=-bound2, maxval=bound2)
    return w1_t, b1, w2_row, b2


def _reference(x, w1_t, b1, w2_row, b2):
    hp = jnp.dot(x, w1_t, precision=jax.lax.Precision.HIGHEST) + b1
    h = jax.nn.sigmoid(hp)
    yp = jnp.dot(h, w2_row.T, precision=jax.lax.Precision.HIGHEST) + b2
    return jax.nn.sigmoid(yp)


if __name__ == "__main__":
    key = jax.random.PRNGKey(0)
    k_params, k_x1, k_x2 = jax.random.split(key, 3)
    w1_t, b1, w2_row, b2 = init_params(k_params)

    # Small smoke test (single tile).
    B1 = 8
    x1 = jax.random.normal(k_x1, (B1, INPUT_SIZE), jnp.float32)
    out1 = jax.block_until_ready(linear_net_forward(x1, w1_t, b1, w2_row, b2))
    ref1 = _reference(x1, w1_t, b1, w2_row, b2)
    assert out1.shape == (B1, OUTPUT_SIZE)
    assert jnp.allclose(out1, ref1, atol=1e-4, rtol=1e-4), \
        float(jnp.max(jnp.abs(out1 - ref1)))

    # Multi-tile test: exercises the batch grid, ragged-batch padding, resident
    # weights across grid steps, and the lane-dense output index_map.
    B2 = 700
    x2 = jax.random.normal(k_x2, (B2, INPUT_SIZE), jnp.float32)
    out2 = jax.block_until_ready(
        linear_net_forward(x2, w1_t, b1, w2_row, b2, tile_b=256))
    ref2 = _reference(x2, w1_t, b1, w2_row, b2)
    assert out2.shape == (B2, OUTPUT_SIZE)
    assert jnp.allclose(out2, ref2, atol=1e-4, rtol=1e-4), \
        float(jnp.max(jnp.abs(out2 - ref2)))

    print("KERNEL_OK")
</pallas_src>

<mosaic_0001>
module attributes {stable_mosaic.version = 11 : i64} {
  func.func @_mlp_kernel(%arg0: i32, %arg1: memref<256x32xf32, #tpu.memory_space<vmem>>, %arg2: memref<32x64xf32, #tpu.memory_space<vmem>>, %arg3: memref<1x64xf32, #tpu.memory_space<vmem>>, %arg4: memref<8x64xf32, #tpu.memory_space<vmem>>, %arg5: memref<1xf32, #tpu.memory_space<smem>>, %arg6: memref<1x256xf32, #tpu.memory_space<vmem>>) attributes {dimension_semantics = [#tpu.dimension_semantics<parallel>], iteration_bounds = array<i64: 1>, scalar_prefetch = 0 : i64, scratch_operands = 0 : i64, tpu.core_type = #tpu.core_type<tc>, window_params = [{transform_indices = @transform_0, window_bounds = array<i64: 256, 32>}, {pipeline_mode = #tpu.pipeline_mode<synchronous>, transform_indices = @transform_1, window_bounds = array<i64: 32, 64>}, {pipeline_mode = #tpu.pipeline_mode<synchronous>, transform_indices = @transform_2, window_bounds = array<i64: 1, 64>}, {pipeline_mode = #tpu.pipeline_mode<synchronous>, transform_indices = @transform_3, window_bounds = array<i64: 8, 64>}, {transform_indices = @transform_4, window_bounds = array<i64: 1>}, {transform_indices = @transform_5, window_bounds = array<i64: 1, 256>}]} {
    %c0 = arith.constant 0 : index
    %c0_0 = arith.constant 0 : index
    %0 = vector.load %arg1[%c0, %c0_0] : memref<256x32xf32, #tpu.memory_space<vmem>>, vector<256x32xf32>
    %c0_1 = arith.constant 0 : index
    %c0_2 = arith.constant 0 : index
    %1 = vector.load %arg2[%c0_1, %c0_2] : memref<32x64xf32, #tpu.memory_space<vmem>>, vector<32x64xf32>
    %cst = arith.constant dense<0.000000e+00> : vector<256x64xf32>
    %2 = tpu.matmul %0, %1, %cst {dimension_numbers = #tpu.dot_dimension_numbers<[1], [0], [0], [1], [0, 0, 1, 1], [], []>} : vector<256x32xf32>, vector<32x64xf32>, vector<256x64xf32> -> vector<256x64xf32>
    %c0_3 = arith.constant 0 : index
    %c0_4 = arith.constant 0 : index
    %3 = vector.load %arg3[%c0_3, %c0_4] : memref<1x64xf32, #tpu.memory_space<vmem>>, vector<1x64xf32>
    %4 = vector.broadcast %3 : vector<1x64xf32> to vector<256x64xf32>
    %5 = arith.addf %2, %4 : vector<256x64xf32>
    %6 = arith.negf %5 : vector<256x64xf32>
    %7 = math.exp %6 : vector<256x64xf32>
    %cst_5 = arith.constant 1.000000e+00 : f32
    %8 = vector.broadcast %cst_5 : f32 to vector<256x64xf32>
    %9 = arith.addf %8, %7 : vector<256x64xf32>
    %10 = arith.divf %8, %9 : vector<256x64xf32>
    %c0_6 = arith.constant 0 : index
    %c0_7 = arith.constant 0 : index
    %11 = vector.load %arg4[%c0_6, %c0_7] : memref<8x64xf32, #tpu.memory_space<vmem>>, vector<8x64xf32>
    %cst_8 = arith.constant dense<0.000000e+00> : vector<8x256xf32>
    %12 = tpu.matmul %11, %10, %cst_8 {dimension_numbers = #tpu.dot_dimension_numbers<[1], [1], [0], [0], [0, 0, 1, 0], [], []>} : vector<8x64xf32>, vector<256x64xf32>, vector<8x256xf32> -> vector<8x256xf32>
    %13 = vector.extract_strided_slice %12 {offsets = [0, 0], sizes = [1, 256], strides = [1, 1]} : vector<8x256xf32> to vector<1x256xf32>
    %c0_9 = arith.constant 0 : index
    %14 = memref.load %arg5[%c0_9] : memref<1xf32, #tpu.memory_space<smem>>
    %15 = vector.broadcast %14 : f32 to vector<1x256xf32>
    %16 = arith.addf %13, %15 : vector<1x256xf32>
    %17 = arith.negf %16 : vector<1x256xf32>
    %18 = math.exp %17 : vector<1x256xf32>
    %cst_10 = arith.constant 1.000000e+00 : f32
    %19 = vector.broadcast %cst_10 : f32 to vector<1x256xf32>
    %20 = arith.addf %19, %18 : vector<1x256xf32>
    %21 = arith.divf %19, %20 : vector<1x256xf32>
    %c0_11 = arith.constant 0 : index
    %c0_12 = arith.constant 0 : index
    %22 = vector.load %arg6[%c0_11, %c0_12] : memref<1x256xf32, #tpu.memory_space<vmem>>, vector<1x256xf32>
    tpu.vector_store %arg6[%c0_11, %c0_12], %21 {strides = array<i32>} : memref<1x256xf32, #tpu.memory_space<vmem>>, vector<1x256xf32>,
    return
  }
  func.func @transform_0(%arg0: i32) -> (i32, i32) {
    %c0_i32 = arith.constant 0 : i32
    %c0_i32_0 = arith.constant 0 : i32
    return %arg0, %c0_i32 : i32, i32
  }
  func.func @transform_1(%arg0: i32) -> (i32, i32) {
    %c0_i32 = arith.constant 0 : i32
    %c0_i32_0 = arith.constant 0 : i32
    %c0_i32_1 = arith.constant 0 : i32
    return %c0_i32, %c0_i32_0 : i32, i32
  }
  func.func @transform_2(%arg0: i32) -> (i32, i32) {
    %c0_i32 = arith.constant 0 : i32
    %c0_i32_0 = arith.constant 0 : i32
    %c0_i32_1 = arith.constant 0 : i32
    return %c0_i32, %c0_i32_0 : i32, i32
  }
  func.func @transform_3(%arg0: i32) -> (i32, i32) {
    %c0_i32 = arith.constant 0 : i32
    %c0_i32_0 = arith.constant 0 : i32
    %c0_i32_1 = arith.constant 0 : i32
    return %c0_i32, %c0_i32_0 : i32, i32
  }
  func.func @transform_4(%arg0: i32) -> i32 {
    %c0_i32 = arith.constant 0 : i32
    %c0_i32_0 = arith.constant 0 : i32
    return %c0_i32 : i32
  }
  func.func @transform_5(%arg0: i32) -> (i32, i32) {
    %c0_i32 = arith.constant 0 : i32
    %c0_i32_0 = arith.constant 0 : i32
    return %c0_i32, %arg0 : i32, i32
  }
}

</mosaic_0001>

<llo_original>
// kernel: tpu_custom_call.1
$region0: #{tpu_custom_call.1}
  #allocation0 [shape = 'u32[]', space=smem, size = 0x4, offset = 0x4, fixed_abs, tag = 'smem constant byte address 0x4 - core index']
  #allocation1 [shape = 'u32[144,128]{1,0:T(1,128)}', space=vmem, size = 0x12000, scoped, tag = 'internal scratch']
  #allocation2 [shape = 'f32[1]{0:T(128)S(6)}', space=smem, size = 0x200, scoped, tag = 'scoped memory for tpu_custom_call.1']
  %s0 = inlined_call_operand.vmem [shape: f32[256,32], index: 0, kind: input, shape index: {}]
  %s1 = inlined_call_operand.vmem [shape: f32[32,64], index: 1, kind: input, shape index: {}]
  %s2 = inlined_call_operand.vmem [shape: f32[1,64], index: 2, kind: input, shape index: {}]
  %s3 = inlined_call_operand.vmem [shape: f32[8,64], index: 3, kind: input, shape index: {}]
  %s4 = inlined_call_operand.<no memory space> [shape: f32[1], index: 4, kind: input, shape index: {}]
  %s5 = inlined_call_operand.hbm [shape: f32[1,256], index: 5, kind: output, shape index: {}]
  %s6 = sld [smem:[#allocation0]]
  $region30: #{tpu_custom_call.1} parent=0
    _
  %s8 = ssub.s32 1, %s6
  %s9 = scalar_select 0, %s8, %s6
  %10 = sst [smem:[#allocation2]] %s4
  $region1: #{tpu_custom_call.1} parent=0
    #allocation3 [shape = 'u8[1024]{0}', space=vmem, size = 0x400, scoped, tag = 'output window, operand 0, single buffered']
    #allocation4 [shape = 's32[1]{0}', space=sflag, size = 0x4, scoped, tag = 'scoped memory for tpu_custom_call.1']
    %11 = vsyncpa [#allocation4], 0
    // Predicated region
    $region2: #{tpu_custom_call.1} parent=1 // pred_check
      _
    $region3: #{tpu_custom_call.1} parent=1 // pred_check_branch
      %13 = sbr.rel (0) target = $region5
    $region4: #{tpu_custom_call.1} parent=1 // pred_region
      _
    $region5: #{tpu_custom_call.1} parent=1 // pred_fallthru
      _
    // Predicated region
    $region6: #{tpu_custom_call.1} parent=1 // pred_check
      _
    $region7: #{tpu_custom_call.1} parent=1 // pred_check_branch
      %15 = sbr.rel (0) target = $region9
    $region8: #{tpu_custom_call.1} parent=1 // pred_region
      _
    $region9: #{tpu_custom_call.1} parent=1 // pred_fallthru
      _
    // Predicated region
    $region10: #{tpu_custom_call.1} parent=1 // pred_check
      _
    $region11: #{tpu_custom_call.1} parent=1 // pred_check_branch
      %17 = sbr.rel (0) target = $region13
    $region12: #{tpu_custom_call.1} parent=1 // pred_region
      _
    $region13: #{tpu_custom_call.1} parent=1 // pred_fallthru
      _
    // Predicated region
    $region14: #{tpu_custom_call.1} parent=1 // pred_check
      _
    $region15: #{tpu_custom_call.1} parent=1 // pred_check_branch
      %19 = sbr.rel (0) target = $region17
    $region16: #{tpu_custom_call.1} parent=1 // pred_region
      _
    $region17: #{tpu_custom_call.1} parent=1 // pred_fallthru
      _
    // Predicated region
    $region18: #{tpu_custom_call.1} parent=1 // pred_check
      _
    $region19: #{tpu_custom_call.1} parent=1 // pred_check_branch
      %21 = sbr.rel (0) target = $region21
    $region20: #{tpu_custom_call.1} parent=1 // pred_region
      _
    $region21: #{tpu_custom_call.1} parent=1 // pred_fallthru
      _
    %v22 = vld [vmem:[%s0] sm:$0xff]
    %v23 = vld [vmem:[%s0 + $0x8] sm:$0xff]
    %v24 = vld [vmem:[%s0 + $0x10] sm:$0xff]
    %v25 = vld [vmem:[%s0 + $0x18] sm:$0xff]
    %v26 = vld [vmem:[%s0 + $0x20] sm:$0xff]
    %v27 = vld [vmem:[%s0 + $0x28] sm:$0xff]
    %v28 = vld [vmem:[%s0 + $0x30] sm:$0xff]
    %v29 = vld [vmem:[%s0 + $0x38] sm:$0xff]
    %v30 = vld [vmem:[%s0 + $0x40] sm:$0xff]
    %v31 = vld [vmem:[%s0 + $0x48] sm:$0xff]
    %v32 = vld [vmem:[%s0 + $0x50] sm:$0xff]
    %v33 = vld [vmem:[%s0 + $0x58] sm:$0xff]
    %v34 = vld [vmem:[%s0 + $0x60] sm:$0xff]
    %v35 = vld [vmem:[%s0 + $0x68] sm:$0xff]
    %v36 = vld [vmem:[%s0 + $0x70] sm:$0xff]
    %v37 = vld [vmem:[%s0 + $0x78] sm:$0xff]
    %v38 = vld [vmem:[%s0 + $0x80] sm:$0xff]
    %v39 = vld [vmem:[%s0 + $0x88] sm:$0xff]
    %v40 = vld [vmem:[%s0 + $0x90] sm:$0xff]
    %v41 = vld [vmem:[%s0 + $0x98] sm:$0xff]
    %v42 = vld [vmem:[%s0 + $0xa0] sm:$0xff]
    %v43 = vld [vmem:[%s0 + $0xa8] sm:$0xff]
    %v44 = vld [vmem:[%s0 + $0xb0] sm:$0xff]
    %v45 = vld [vmem:[%s0 + $0xb8] sm:$0xff]
    %v46 = vld [vmem:[%s0 + $0xc0] sm:$0xff]
    %v47 = vld [vmem:[%s0 + $0xc8] sm:$0xff]
    %v48 = vld [vmem:[%s0 + $0xd0] sm:$0xff]
    %v49 = vld [vmem:[%s0 + $0xd8] sm:$0xff]
    %v50 = vld [vmem:[%s0 + $0xe0] sm:$0xff]
    %v51 = vld [vmem:[%s0 + $0xe8] sm:$0xff]
    %v52 = vld [vmem:[%s0 + $0xf0] sm:$0xff]
    %v53 = vld [vmem:[%s0 + $0xf8] sm:$0xff]
    %v54 = vld [vmem:[%s1] sm:$0xff]
    %v55 = vld [vmem:[%s1 + $0x8] sm:$0xff]
    %v56 = vld [vmem:[%s1 + $0x10] sm:$0xff]
    %v57 = vld [vmem:[%s1 + $0x18] sm:$0xff]
    %v58 = vld [vmem:[%s2] sm:$0x1]
    %v60 = vlaneseq
    %v61 = vshrl.u32 %v60, 7
    %v62 = vsub.s32 0, %v61
    %v63 = vrot.slane %v58, %v62
    %vm65 = vcmask 261120
    %v67 = vsel %vm65, %v22, 0
    %v70 = vsel %vm65, %v23, 0
    %v73 = vsel %vm65, %v24, 0
    %v76 = vsel %vm65, %v25, 0
    %v79 = vsel %vm65, %v26, 0
    %v82 = vsel %vm65, %v27, 0
    %v85 = vsel %vm65, %v28, 0
    %v88 = vsel %vm65, %v29, 0
    %v91 = vsel %vm65, %v30, 0
    %v94 = vsel %vm65, %v31, 0
    %v97 = vsel %vm65, %v32, 0
    %v100 = vsel %vm65, %v33, 0
    %v103 = vsel %vm65, %v34, 0
    %v106 = vsel %vm65, %v35, 0
    %v109 = vsel %vm65, %v36, 0
    %v112 = vsel %vm65, %v37, 0
    %v115 = vsel %vm65, %v38, 0
    %v118 = vsel %vm65, %v39, 0
    %v121 = vsel %vm65, %v40, 0
    %v124 = vsel %vm65, %v41, 0
    %v127 = vsel %vm65, %v42, 0
    %v130 = vsel %vm65, %v43, 0
    %v133 = vsel %vm65, %v44, 0
    %v136 = vsel %vm65, %v45, 0
    %v139 = vsel %vm65, %v46, 0
    %v142 = vsel %vm65, %v47, 0
    %v145 = vsel %vm65, %v48, 0
    %v148 = vsel %vm65, %v49, 0
    %v151 = vsel %vm65, %v50, 0
    %v154 = vsel %vm65, %v51, 0
    %v157 = vsel %vm65, %v52, 0
    %v160 = vsel %vm65, %v53, 0
    %162 = vmatprep.subr.mxu0 0.0
    %163 = vmatpush1.msra.mxu0 %v54
    %164 = vmatprep.subr.mxu0 0.0
    %165 = vmatpush1.msra.mxu0 %v55
    %166 = vmatprep.subr.mxu0 0.0
    %167 = vmatpush1.msra.mxu0 %v56
    %168 = vmatprep.subr.mxu0 0.0
    %169 = vmatpush1.msra.mxu0 %v57
    %170 = vmatprep.subr.mxu0 0.0
    %171 = vmatpush1.msra.mxu0 0.0
    %172 = vmatprep.subr.mxu0 0.0
    %173 = vmatpush1.msra.mxu0 0.0
    %174 = vmatprep.subr.mxu0 0.0
    %175 = vmatpush1.msra.mxu0 0.0
    %176 = vmatprep.subr.mxu0 0.0
    %177 = vmatpush1.msra.mxu0 0.0
    %178 = vmatprep.subr.mxu0 0.0
    %179 = vmatpush1.msra.mxu0 0.0
    %180 = vmatprep.subr.mxu0 0.0
    %181 = vmatpush1.msra.mxu0 0.0
    %182 = vmatprep.subr.mxu0 0.0
    %183 = vmatpush1.msra.mxu0 0.0
    %184 = vmatprep.subr.mxu0 0.0
    %185 = vmatpush1.msra.mxu0 0.0
    %186 = vmatprep.subr.mxu0 0.0
    %187 = vmatpush1.msra.mxu0 0.0
    %188 = vmatprep.subr.mxu0 0.0
    %189 = vmatpush1.msra.mxu0 0.0
    %190 = vmatprep.subr.mxu0 0.0
    %191 = vmatpush1.msra.mxu0 0.0
    %192 = vmatprep.subr.mxu0 0.0
    %193 = vmatpush1.msra.mxu0 0.0
    %194 = vmatprep.subr.mxu0 0.0
    %195 = vmatpush1.msra.mxu0 0.0
    %196 = vmatprep.subr.mxu0 0.0
    %197 = vmatpush1.msra.mxu0 0.0
    %198 = vmatprep.subr.mxu0 0.0
    %199 = vmatpush1.msra.mxu0 0.0
    %200 = vmatprep.subr.mxu0 0.0
    %201 = vmatpush1.msra.mxu0 0.0
    %202 = vmatprep.subr.mxu0 0.0
    %203 = vmatpush1.msra.mxu0 0.0
    %204 = vmatprep.subr.mxu0 0.0
    %205 = vmatpush1.msra.mxu0 0.0
    %206 = vmatprep.subr.mxu0 0.0
    %207 = vmatpush1.msra.mxu0 0.0
    %208 = vmatprep.subr.mxu0 0.0
    %209 = vmatpush1.msra.mxu0 0.0
    %210 = vmatprep.subr.mxu0 0.0
    %211 = vmatpush1.msra.mxu0 0.0
    %212 = vmatprep.subr.mxu0 0.0
    %213 = vmatpush1.msra.mxu0 0.0
    %214 = vmatprep.subr.mxu0 0.0
    %215 = vmatpush1.msra.mxu0 0.0
    %216 = vmatprep.subr.mxu0 0.0
    %217 = vmatpush1.msra.mxu0 0.0
    %218 = vmatprep.subr.mxu0 0.0
    %219 = vmatpush1.msra.mxu0 0.0
    %220 = vmatprep.subr.mxu0 0.0
    %221 = vmatpush1.msra.mxu0 0.0
    %222 = vmatprep.subr.mxu0 0.0
    %223 = vmatpush1.msra.mxu0 0.0
    %224 = vmatprep.subr.mxu0 0.0
    %225 = vmatpush1.msra.mxu0 0.0
    %226 = vmatprep.mubr.f32.mxu0 0.0
    %227 = vmatmul.mubr.f32.gmra.mrb[0].mxu0 %v67
    %v228 = vpop.f32.mrb[0].mxu0
    %v229 = vadd.f32 %v63, %v228
    %v230 = vpop.f32.mrb[0].mxu0
    %231 = vmatprep.mubr.f32.mxu0 0.0
    %232 = vmatmul.mubr.f32.gmra.mrb[0].mxu0 %v70
    %v233 = vpop.f32.mrb[0].mxu0
    %v234 = vadd.f32 %v63, %v233
    %v235 = vpop.f32.mrb[0].mxu0
    %236 = vmatprep.mubr.f32.mxu0 0.0
    %237 = vmatmul.mubr.f32.gmra.mrb[0].mxu0 %v73
    %v238 = vpop.f32.mrb[0].mxu0
    %v239 = vadd.f32 %v63, %v238
    %v240 = vpop.f32.mrb[0].mxu0
    %241 = vmatprep.mubr.f32.mxu0 0.0
    %242 = vmatmul.mubr.f32.gmra.mrb[0].mxu0 %v76
    %v243 = vpop.f32.mrb[0].mxu0
    %v244 = vadd.f32 %v63, %v243
    %v245 = vpop.f32.mrb[0].mxu0
    %246 = vmatprep.mubr.f32.mxu0 0.0
    %247 = vmatmul.mubr.f32.gmra.mrb[0].mxu0 %v79
    %v248 = vpop.f32.mrb[0].mxu0
    %v249 = vadd.f32 %v63, %v248
    %v250 = vpop.f32.mrb[0].mxu0
    %251 = vmatprep.mubr.f32.mxu0 0.0
    %252 = vmatmul.mubr.f32.gmra.mrb[0].mxu0 %v82
    %v253 = vpop.f32.mrb[0].mxu0
    %v254 = vadd.f32 %v63, %v253
    %v255 = vpop.f32.mrb[0].mxu0
    %256 = vmatprep.mubr.f32.mxu0 0.0
    %257 = vmatmul.mubr.f32.gmra.mrb[0].mxu0 %v85
    %v258 = vpop.f32.mrb[0].mxu0
    %v259 = vadd.f32 %v63, %v258
    %v260 = vpop.f32.mrb[0].mxu0
    %261 = vmatprep.mubr.f32.mxu0 0.0
    %262 = vmatmul.mubr.f32.gmra.mrb[0].mxu0 %v88
    %v263 = vpop.f32.mrb[0].mxu0
    %v264 = vadd.f32 %v63, %v263
    %v265 = vpop.f32.mrb[0].mxu0
    %266 = vmatprep.mubr.f32.mxu0 0.0
    %267 = vmatmul.mubr.f32.gmra.mrb[0].mxu0 %v91
    %v268 = vpop.f32.mrb[0].mxu0
    %v269 = vadd.f32 %v63, %v268
    %v270 = vpop.f32.mrb[0].mxu0
    %271 = vmatprep.mubr.f32.mxu0 0.0
    %272 = vmatmul.mubr.f32.gmra.mrb[0].mxu0 %v94
    %v273 = vpop.f32.mrb[0].mxu0
    %v274 = vadd.f32 %v63, %v273
    %v275 = vpop.f32.mrb[0].mxu0
    %276 = vmatprep.mubr.f32.mxu0 0.0
    %277 = vmatmul.mubr.f32.gmra.mrb[0].mxu0 %v97
    %v278 = vpop.f32.mrb[0].mxu0
    %v279 = vadd.f32 %v63, %v278
    %v280 = vpop.f32.mrb[0].mxu0
    %281 = vmatprep.mubr.f32.mxu0 0.0
    %282 = vmatmul.mubr.f32.gmra.mrb[0].mxu0 %v100
    %v283 = vpop.f32.mrb[0].mxu0
    %v284 = vadd.f32 %v63, %v283
    %v285 = vpop.f32.mrb[0].mxu0
    %286 = vmatprep.mubr.f32.mxu0 0.0
    %287 = vmatmul.mubr.f32.gmra.mrb[0].mxu0 %v103
    %v288 = vpop.f32.mrb[0].mxu0
    %v289 = vadd.f32 %v63, %v288
    %v290 = vpop.f32.mrb[0].mxu0
    %291 = vmatprep.mubr.f32.mxu0 0.0
    %292 = vmatmul.mubr.f32.gmra.mrb[0].mxu0 %v106
    %v293 = vpop.f32.mrb[0].mxu0
    %v294 = vadd.f32 %v63, %v293
    %v295 = vpop.f32.mrb[0].mxu0
    %296 = vmatprep.mubr.f32.mxu0 0.0
    %297 = vmatmul.mubr.f32.gmra.mrb[0].mxu0 %v109
    %v298 = vpop.f32.mrb[0].mxu0
    %v299 = vadd.f32 %v63, %v298
    %v300 = vpop.f32.mrb[0].mxu0
    %301 = vmatprep.mubr.f32.mxu0 0.0
    %302 = vmatmul.mubr.f32.gmra.mrb[0].mxu0 %v112
    %v303 = vpop.f32.mrb[0].mxu0
    %v304 = vadd.f32 %v63, %v303
    %v305 = vpop.f32.mrb[0].mxu0
    %306 = vmatprep.mubr.f32.mxu0 0.0
    %307 = vmatmul.mubr.f32.gmra.mrb[0].mxu0 %v115
    %v308 = vpop.f32.mrb[0].mxu0
    %v309 = vadd.f32 %v63, %v308
    %v310 = vpop.f32.mrb[0].mxu0
    %311 = vmatprep.mubr.f32.mxu0 0.0
    %312 = vmatmul.mubr.f32.gmra.mrb[0].mxu0 %v118
    %v313 = vpop.f32.mrb[0].mxu0
    %v314 = vadd.f32 %v63, %v313
    %v315 = vpop.f32.mrb[0].mxu0
    %316 = vmatprep.mubr.f32.mxu0 0.0
    %317 = vmatmul.mubr.f32.gmra.mrb[0].mxu0 %v121
    %v318 = vpop.f32.mrb[0].mxu0
    %v319 = vadd.f32 %v63, %v318
    %v320 = vpop.f32.mrb[0].mxu0
    %321 = vmatprep.mubr.f32.mxu0 0.0
    %322 = vmatmul.mubr.f32.gmra.mrb[0].mxu0 %v124
    %v323 = vpop.f32.mrb[0].mxu0
    %v324 = vadd.f32 %v63, %v323
    %v325 = vpop.f32.mrb[0].mxu0
    %326 = vmatprep.mubr.f32.mxu0 0.0
    %327 = vmatmul.mubr.f32.gmra.mrb[0].mxu0 %v127
    %v328 = vpop.f32.mrb[0].mxu0
    %v329 = vadd.f32 %v63, %v328
    %v330 = vpop.f32.mrb[0].mxu0
    %331 = vmatprep.mubr.f32.mxu0 0.0
    %332 = vmatmul.mubr.f32.gmra.mrb[0].mxu0 %v130
    %v333 = vpop.f32.mrb[0].mxu0
    %v334 = vadd.f32 %v63, %v333
    %v335 = vpop.f32.mrb[0].mxu0
    %336 = vmatprep.mubr.f32.mxu0 0.0
    %337 = vmatmul.mubr.f32.gmra.mrb[0].mxu0 %v133
    %v338 = vpop.f32.mrb[0].mxu0
    %v339 = vadd.f32 %v63, %v338
    %v340 = vpop.f32.mrb[0].mxu0
    %341 = vmatprep.mubr.f32.mxu0 0.0
    %342 = vmatmul.mubr.f32.gmra.mrb[0].mxu0 %v136
    %v343 = vpop.f32.mrb[0].mxu0
    %v344 = vadd.f32 %v63, %v343
    %v345 = vpop.f32.mrb[0].mxu0
    %346 = vmatprep.mubr.f32.mxu0 0.0
    %347 = vmatmul.mubr.f32.gmra.mrb[0].mxu0 %v139
    %v348 = vpop.f32.mrb[0].mxu0
    %v349 = vadd.f32 %v63, %v348
    %v350 = vpop.f32.mrb[0].mxu0
    %351 = vmatprep.mubr.f32.mxu0 0.0
    %352 = vmatmul.mubr.f32.gmra.mrb[0].mxu0 %v142
    %v353 = vpop.f32.mrb[0].mxu0
    %v354 = vadd.f32 %v63, %v353
    %v355 = vpop.f32.mrb[0].mxu0
    %356 = vmatprep.mubr.f32.mxu0 0.0
    %357 = vmatmul.mubr.f32.gmra.mrb[0].mxu0 %v145
    %v358 = vpop.f32.mrb[0].mxu0
    %v359 = vadd.f32 %v63, %v358
    %v360 = vpop.f32.mrb[0].mxu0
    %361 = vmatprep.mubr.f32.mxu0 0.0
    %362 = vmatmul.mubr.f32.gmra.mrb[0].mxu0 %v148
    %v363 = vpop.f32.mrb[0].mxu0
    %v364 = vadd.f32 %v63, %v363
    %v365 = vpop.f32.mrb[0].mxu0
    %366 = vmatprep.mubr.f32.mxu0 0.0
    %367 = vmatmul.mubr.f32.gmra.mrb[0].mxu0 %v151
    %v368 = vpop.f32.mrb[0].mxu0
    %v369 = vadd.f32 %v63, %v368
    %v370 = vpop.f32.mrb[0].mxu0
    %371 = vmatprep.mubr.f32.mxu0 0.0
    %372 = vmatmul.mubr.f32.gmra.mrb[0].mxu0 %v154
    %v373 = vpop.f32.mrb[0].mxu0
    %v374 = vadd.f32 %v63, %v373
    %v375 = vpop.f32.mrb[0].mxu0
    %376 = vmatprep.mubr.f32.mxu0 0.0
    %377 = vmatmul.mubr.f32.gmra.mrb[0].mxu0 %v157
    %v378 = vpop.f32.mrb[0].mxu0
    %v379 = vadd.f32 %v63, %v378
    %v380 = vpop.f32.mrb[0].mxu0
    %381 = vmatprep.mubr.f32.mxu0 0.0
    %382 = vmatmul.mubr.f32.gmra.mrb[0].mxu0 %v160
    %v383 = vpop.f32.mrb[0].mxu0
    %v384 = vadd.f32 %v63, %v383
    %v385 = vpop.f32.mrb[0].mxu0
    %386 = vdwg.mxu0
    %v387 = vxor.u32 %v229, 2147483648
    %v388 = vxor.u32 %v234, 2147483648
    %v389 = vxor.u32 %v239, 2147483648
    %v390 = vxor.u32 %v244, 2147483648
    %v391 = vxor.u32 %v249, 2147483648
    %v392 = vxor.u32 %v254, 2147483648
    %v393 = vxor.u32 %v259, 2147483648
    %v394 = vxor.u32 %v264, 2147483648
    %v395 = vxor.u32 %v269, 2147483648
    %v396 = vxor.u32 %v274, 2147483648
    %v397 = vxor.u32 %v279, 2147483648
    %v398 = vxor.u32 %v284, 2147483648
    %v399 = vxor.u32 %v289, 2147483648
    %v400 = vxor.u32 %v294, 2147483648
    %v401 = vxor.u32 %v299, 2147483648
    %v402 = vxor.u32 %v304, 2147483648
    %v403 = vxor.u32 %v309, 2147483648
    %v404 = vxor.u32 %v314, 2147483648
    %v405 = vxor.u32 %v319, 2147483648
    %v406 = vxor.u32 %v324, 2147483648
    %v407 = vxor.u32 %v329, 2147483648
    %v408 = vxor.u32 %v334, 2147483648
    %v409 = vxor.u32 %v339, 2147483648
    %v410 = vxor.u32 %v344, 2147483648
    %v411 = vxor.u32 %v349, 2147483648
    %v412 = vxor.u32 %v354, 2147483648
    %v413 = vxor.u32 %v359, 2147483648
    %v414 = vxor.u32 %v364, 2147483648
    %v415 = vxor.u32 %v369, 2147483648
    %v416 = vxor.u32 %v374, 2147483648
    %v417 = vxor.u32 %v379, 2147483648
    %v418 = vxor.u32 %v384, 2147483648
    %v419 = vmul.f32 %v387, 1.442695
    %v420 = vpow.pop %v419
    %v421 = vmul.f32 %v388, 1.442695
    %v422 = vpow.pop %v421
    %v423 = vmul.f32 %v389, 1.442695
    %v424 = vpow.pop %v423
    %v425 = vmul.f32 %v390, 1.442695
    %v426 = vpow.pop %v425
    %v427 = vmul.f32 %v391, 1.442695
    %v428 = vpow.pop %v427
    %v429 = vmul.f32 %v392, 1.442695
    %v430 = vpow.pop %v429
    %v431 = vmul.f32 %v393, 1.442695
    %v432 = vpow.pop %v431
    %v433 = vmul.f32 %v394, 1.442695
    %v434 = vpow.pop %v433
    %v435 = vmul.f32 %v395, 1.442695
    %v436 = vpow.pop %v435
    %v437 = vmul.f32 %v396, 1.442695
    %v438 = vpow.pop %v437
    %v439 = vmul.f32 %v397, 1.442695
    %v440 = vpow.pop %v439
    %v441 = vmul.f32 %v398, 1.442695
    %v442 = vpow.pop %v441
    %v443 = vmul.f32 %v399, 1.442695
    %v444 = vpow.pop %v443
    %v445 = vmul.f32 %v400, 1.442695
    %v446 = vpow.pop %v445
    %v447 = vmul.f32 %v401, 1.442695
    %v448 = vpow.pop %v447
    %v449 = vmul.f32 %v402, 1.442695
    %v450 = vpow.pop %v449
    %v451 = vmul.f32 %v403, 1.442695
    %v452 = vpow.pop %v451
    %v453 = vmul.f32 %v404, 1.442695
    %v454 = vpow.pop %v453
    %v455 = vmul.f32 %v405, 1.442695
    %v456 = vpow.pop %v455
    %v457 = vmul.f32 %v406, 1.442695
    %v458 = vpow.pop %v457
    %v459 = vmul.f32 %v407, 1.442695
    %v460 = vpow.pop %v459
    %v461 = vmul.f32 %v408, 1.442695
    %v462 = vpow.pop %v461
    %v463 = vmul.f32 %v409, 1.442695
    %v464 = vpow.pop %v463
    %v465 = vmul.f32 %v410, 1.442695
    %v466 = vpow.pop %v465
    %v467 = vmul.f32 %v411, 1.442695
    %v468 = vpow.pop %v467
    %v469 = vmul.f32 %v412, 1.442695
    %v470 = vpow.pop %v469
    %v471 = vmul.f32 %v413, 1.442695
    %v472 = vpow.pop %v471
    %v473 = vmul.f32 %v414, 1.442695
    %v474 = vpow.pop %v473
    %v475 = vmul.f32 %v415, 1.442695
    %v476 = vpow.pop %v475
    %v477 = vmul.f32 %v416, 1.442695
    %v478 = vpow.pop %v477
    %v479 = vmul.f32 %v417, 1.442695
    %v480 = vpow.pop %v479
    %v481 = vmul.f32 %v418, 1.442695
    %v482 = vpow.pop %v481
    %v483 = vadd.f32 %v420, 1.0
    %v484 = vadd.f32 %v422, 1.0
    %v485 = vadd.f32 %v424, 1.0
    %v486 = vadd.f32 %v426, 1.0
    %v487 = vadd.f32 %v428, 1.0
    %v488 = vadd.f32 %v430, 1.0
    %v489 = vadd.f32 %v432, 1.0
    %v490 = vadd.f32 %v434, 1.0
    %v491 = vadd.f32 %v436, 1.0
    %v492 = vadd.f32 %v438, 1.0
    %v493 = vadd.f32 %v440, 1.0
    %v494 = vadd.f32 %v442, 1.0
    %v495 = vadd.f32 %v444, 1.0
    %v496 = vadd.f32 %v446, 1.0
    %v497 = vadd.f32 %v448, 1.0
    %v498 = vadd.f32 %v450, 1.0
    %v499 = vadd.f32 %v452, 1.0
    %v500 = vadd.f32 %v454, 1.0
    %v501 = vadd.f32 %v456, 1.0
    %v502 = vadd.f32 %v458, 1.0
    %v503 = vadd.f32 %v460, 1.0
    %v504 = vadd.f32 %v462, 1.0
    %v505 = vadd.f32 %v464, 1.0
    %v506 = vadd.f32 %v466, 1.0
    %v507 = vadd.f32 %v468, 1.0
    %v508 = vadd.f32 %v470, 1.0
    %v509 = vadd.f32 %v472, 1.0
    %v510 = vadd.f32 %v474, 1.0
    %v511 = vadd.f32 %v476, 1.0
    %v512 = vadd.f32 %v478, 1.0
    %v513 = vadd.f32 %v480, 1.0
    %v514 = vadd.f32 %v482, 1.0
    %v515 = vrcp.pop %v483
    %v516 = vmul.f32 1.0, %v515
    %v517 = vrcp.pop %v484
    %v518 = vmul.f32 1.0, %v517
    %v519 = vrcp.pop %v485
    %v520 = vmul.f32 1.0, %v519
    %v521 = vrcp.pop %v486
    %v522 = vmul.f32 1.0, %v521
    %v523 = vrcp.pop %v487
    %v524 = vmul.f32 1.0, %v523
    %v525 = vrcp.pop %v488
    %v526 = vmul.f32 1.0, %v525
    %v527 = vrcp.pop %v489
    %v528 = vmul.f32 1.0, %v527
    %v529 = vrcp.pop %v490
    %v530 = vmul.f32 1.0, %v529
    %v531 = vrcp.pop %v491
    %v532 = vmul.f32 1.0, %v531
    %v533 = vrcp.pop %v492
    %v534 = vmul.f32 1.0, %v533
    %v535 = vrcp.pop %v493
    %v536 = vmul.f32 1.0, %v535
    %v537 = vrcp.pop %v494
    %v538 = vmul.f32 1.0, %v537
    %v539 = vrcp.pop %v495
    %v540 = vmul.f32 1.0, %v539
    %v541 = vrcp.pop %v496
    %v542 = vmul.f32 1.0, %v541
    %v543 = vrcp.pop %v497
    %v544 = vmul.f32 1.0, %v543
    %v545 = vrcp.pop %v498
    %v546 = vmul.f32 1.0, %v545
    %v547 = vrcp.pop %v499
    %v548 = vmul.f32 1.0, %v547
    %v549 = vrcp.pop %v500
    %v550 = vmul.f32 1.0, %v549
    %v551 = vrcp.pop %v501
    %v552 = vmul.f32 1.0, %v551
    %v553 = vrcp.pop %v502
    %v554 = vmul.f32 1.0, %v553
    %v555 = vrcp.pop %v503
    %v556 = vmul.f32 1.0, %v555
    %v557 = vrcp.pop %v504
    %v558 = vmul.f32 1.0, %v557
    %v559 = vrcp.pop %v505
    %v560 = vmul.f32 1.0, %v559
    %v561 = vrcp.pop %v506
    %v562 = vmul.f32 1.0, %v561
    %v563 = vrcp.pop %v507
    %v564 = vmul.f32 1.0, %v563
    %v565 = vrcp.pop %v508
    %v566 = vmul.f32 1.0, %v565
    %v567 = vrcp.pop %v509
    %v568 = vmul.f32 1.0, %v567
    %v569 = vrcp.pop %v510
    %v570 = vmul.f32 1.0, %v569
    %v571 = vrcp.pop %v511
    %v572 = vmul.f32 1.0, %v571
    %v573 = vrcp.pop %v512
    %v574 = vmul.f32 1.0, %v573
    %v575 = vrcp.pop %v513
    %v576 = vmul.f32 1.0, %v575
    %v577 = vrcp.pop %v514
    %v578 = vmul.f32 1.0, %v577
    %v579 = vld [vmem:[%s3] sm:$0xff]
    %vm580 = vcmask 523264
    %v582 = vsel %vm580, %v579, 0
    %v585 = vsel %vm580, %v516, 0
    %v588 = vsel %vm580, %v518, 0
    %v591 = vsel %vm580, %v520, 0
    %v594 = vsel %vm580, %v522, 0
    %v597 = vsel %vm580, %v524, 0
    %v600 = vsel %vm580, %v526, 0
    %v603 = vsel %vm580, %v528, 0
    %v606 = vsel %vm580, %v530, 0
    %v609 = vsel %vm580, %v532, 0
    %v612 = vsel %vm580, %v534, 0
    %v615 = vsel %vm580, %v536, 0
    %v618 = vsel %vm580, %v538, 0
    %v621 = vsel %vm580, %v540, 0
    %v624 = vsel %vm580, %v542, 0
    %v627 = vsel %vm580, %v544, 0
    %v630 = vsel %vm580, %v546, 0
    %v633 = vsel %vm580, %v548, 0
    %v636 = vsel %vm580, %v550, 0
    %v639 = vsel %vm580, %v552, 0
    %v642 = vsel %vm580, %v554, 0
    %v645 = vsel %vm580, %v556, 0
    %v648 = vsel %vm580, %v558, 0
    %v651 = vsel %vm580, %v560, 0
    %v654 = vsel %vm580, %v562, 0
    %v657 = vsel %vm580, %v564, 0
    %v660 = vsel %vm580, %v566, 0
    %v663 = vsel %vm580, %v568, 0
    %v666 = vsel %vm580, %v570, 0
    %v669 = vsel %vm580, %v572, 0
    %v672 = vsel %vm580, %v574, 0
    %v675 = vsel %vm580, %v576, 0
    %v678 = vsel %vm580, %v578, 0
    %680 = vmatprep.subr.mxu0 0.0
    %681 = vmatpush1.xpose.msra.mxu0 %v585
    %682 = vmatprep.subr.mxu0 0.0
    %683 = vmatpush1.xpose.msra.mxu0 %v588
    %684 = vmatprep.subr.mxu0 0.0
    %685 = vmatpush1.xpose.msra.mxu0 %v591
    %686 = vmatprep.subr.mxu0 0.0
    %687 = vmatpush1.xpose.msra.mxu0 %v594
    %688 = vmatprep.subr.mxu0 0.0
    %689 = vmatpush1.xpose.msra.mxu0 %v597
    %690 = vmatprep.subr.mxu0 0.0
    %691 = vmatpush1.xpose.msra.mxu0 %v600
    %692 = vmatprep.subr.mxu0 0.0
    %693 = vmatpush1.xpose.msra.mxu0 %v603
    %694 = vmatprep.subr.mxu0 0.0
    %695 = vmatpush1.xpose.msra.mxu0 %v606
    %696 = vmatprep.subr.mxu0 0.0
    %697 = vmatpush1.xpose.msra.mxu0 %v609
    %698 = vmatprep.subr.mxu0 0.0
    %699 = vmatpush1.xpose.msra.mxu0 %v612
    %700 = vmatprep.subr.mxu0 0.0
    %701 = vmatpush1.xpose.msra.mxu0 %v615
    %702 = vmatprep.subr.mxu0 0.0
    %703 = vmatpush1.xpose.msra.mxu0 %v618
    %704 = vmatprep.subr.mxu0 0.0
    %705 = vmatpush1.xpose.msra.mxu0 %v621
    %706 = vmatprep.subr.mxu0 0.0
    %707 = vmatpush1.xpose.msra.mxu0 %v624
    %708 = vmatprep.subr.mxu0 0.0
    %709 = vmatpush1.xpose.msra.mxu0 %v627
    %710 = vmatprep.subr.mxu0 0.0
    %711 = vmatpush1.xpose.msra.mxu0 %v630
    %712 = vmatprep.subr.mxu0 0.0
    %713 = vmatpush1.xpose.msra.mxu0 %v633
    %714 = vmatprep.subr.mxu0 0.0
    %715 = vmatpush1.xpose.msra.mxu0 %v636
    %716 = vmatprep.subr.mxu0 0.0
    %717 = vmatpush1.xpose.msra.mxu0 %v639
    %718 = vmatprep.subr.mxu0 0.0
    %719 = vmatpush1.xpose.msra.mxu0 %v642
    %720 = vmatprep.subr.mxu0 0.0
    %721 = vmatpush1.xpose.msra.mxu0 %v645
    %722 = vmatprep.subr.mxu0 0.0
    %723 = vmatpush1.xpose.msra.mxu0 %v648
    %724 = vmatprep.subr.mxu0 0.0
    %725 = vmatpush1.xpose.msra.mxu0 %v651
    %726 = vmatprep.subr.mxu0 0.0
    %727 = vmatpush1.xpose.msra.mxu0 %v654
    %728 = vmatprep.subr.mxu0 0.0
    %729 = vmatpush1.xpose.msra.mxu0 %v657
    %730 = vmatprep.subr.mxu0 0.0
    %731 = vmatpush1.xpose.msra.mxu0 %v660
    %732 = vmatprep.subr.mxu0 0.0
    %733 = vmatpush1.xpose.msra.mxu0 %v663
    %734 = vmatprep.subr.mxu0 0.0
    %735 = vmatpush1.xpose.msra.mxu0 %v666
    %736 = vmatprep.subr.mxu0 0.0
    %737 = vmatpush1.xpose.msra.mxu0 %v669
    %738 = vmatprep.subr.mxu0 0.0
    %739 = vmatpush1.xpose.msra.mxu0 %v672
    %740 = vmatprep.subr.mxu0 0.0
    %741 = vmatpush1.xpose.msra.mxu0 %v675
    %742 = vmatprep.subr.mxu0 0.0
    %743 = vmatpush1.xpose.msra.mxu0 %v678
    %744 = vmatprep.mubr.f32.mxu0 0.0
    %745 = vmatmul.mubr.f32.gmra.mrb[0].mxu0 %v582
    %v746 = vpop.f32.mrb[0].mxu0
    %v747 = vadd.f32 0.0, %v746
    %v748 = vpop.f32.mrb[0].mxu0
    %v749 = vadd.f32 0.0, %v748
    %750 = vdwg.mxu0
    %s751 = sld [smem:[#allocation2]]
    %v752 = vstv %s751
    %v753 = vadd.f32 %v747, %v752
    %v754 = vadd.f32 %v749, %v752
    %v755 = vxor.u32 %v753, 2147483648
    %v756 = vxor.u32 %v754, 2147483648
    %v757 = vmul.f32 %v755, 1.442695
    %v758 = vpow.pop %v757
    %v759 = vmul.f32 %v756, 1.442695
    %v760 = vpow.pop %v759
    %v761 = vadd.f32 %v758, 1.0
    %v762 = vadd.f32 %v760, 1.0
    %v763 = vrcp.pop %v761
    %v764 = vmul.f32 1.0, %v763
    %v765 = vrcp.pop %v762
    %v766 = vmul.f32 1.0, %v765
    %v769 = vcombine.low %v764, %v766
    %v771 = vunpack.c.l.s4 1966171168
    %v772 = vunpack.c.0.s8 %v771
    %v773 = vlaneseq
    %v774 = vshrl.u32 %v773, 7
    %v775 = vsub.s32 %v772, %v774
    %v776 = vrot.slane %v769, %v775
    %v778 = vunpack.c.l.s4 1966171168
    %v779 = vunpack.c.0.s8 %v778
    %v780 = vlaneseq
    %v781 = vshrl.u32 %v780, 7
    %v782 = vsub.s32 %v779, %v781
    %v783 = vrot.slane %v776, %v782
    %v785 = vlaneseq
    %vm786 = vcmp.ge.s32.totalorder %v785, 0
    %vm787 = vcmp.lt.s32.totalorder %v785, 256
    %vm788 = vmand %vm786, %vm787
    %789 = vst.msk [vmem:[#allocation3] sm:$0x3] %vm788, %v783
    // Predicated region
    $region22: #{tpu_custom_call.1} parent=1 // pred_check
      _
    $region23: #{tpu_custom_call.1} parent=1 // pred_check_branch
      %791 = sbr.rel (0) target = $region25
    $region24: #{tpu_custom_call.1} parent=1 // pred_region
      %s793 = ssub.s32 32, 32
      %794 = vsyncadd [#allocation4], %s793
      %s796 = sshll.u32 [#allocation3], 4
      %s797 = int_to_ptr.vmem [resolvable:$true] %s796
      %799 = dma.vmem_to_hbm [thread:$0]  %s797, 32, %s5, [#allocation4]
    $region25: #{tpu_custom_call.1} parent=1 // pred_fallthru
      _
    // Predicated region
    $region26: #{tpu_custom_call.1} parent=1 // pred_check
      _
    $region27: #{tpu_custom_call.1} parent=1 // pred_check_branch
      %801 = sbr.rel (0) target = $region29
    $region28: #{tpu_custom_call.1} parent=1 // pred_region
      %802 = dma.done [#allocation4], 32
    $region29: #{tpu_custom_call.1} parent=1 // pred_fallthru
      _
    %803 = vsyncpa [#allocation4], 1

</llo_original>
